<compile_context>
chip_gen: v7x
topology: tpu7x:2x2x1
jax: 0.10.0
libtpu: 0.0.40
codegen_flags: <defaults>
</compile_context>

<pallas_src>
import functools

import jax
import jax.numpy as jnp
from jax.experimental import pallas as pl
from jax.experimental.pallas import tpu as pltpu


def _round_up(x, m):
    return (x + m - 1) // m * m


def _num_tensorcores():
    """Best-effort TensorCores-per-chip (2 on v4 / v5p / v7x, else 1)."""
    try:
        info = pltpu.get_tpu_info()
        for attr in ("num_cores", "num_tensorcores", "tensor_cores_per_chip",
                     "cores_per_chip", "core_count"):
            v = getattr(info, attr, None)
            if isinstance(v, int) and v > 0:
                return v
    except Exception:
        pass
    try:
        kind = jax.devices()[0].device_kind.lower()
        if ("v4" in kind) or ("v5p" in kind) or ("v7" in kind) or ("tpu7" in kind):
            return 2
    except Exception:
        pass
    return 1


def _pool_strided_kernel(x_ref, o_ref, *, method, p, groups):
    # x_ref block: (b_tile, c, hw_t) — full channel dim on the sublane axis,
    # so no sublane padding waste for p < 8 (f32).  The p-wise reduction is
    # done with p sublane-strided loads (stride p, one per within-group index).
    def gslice(k):
        return x_ref[:, pl.ds(k, groups, p), :]          # (b_tile, groups, hw_t)

    if method == "avg":
        acc = gslice(0).astype(jnp.float32)
        for k in range(1, p):
            acc = acc + gslice(k).astype(jnp.float32)
        o_ref[...] = (acc / p).astype(o_ref.dtype)
    elif method == "max":
        acc = gslice(0)
        for k in range(1, p):
            acc = jnp.maximum(acc, gslice(k))
        o_ref[...] = acc
    else:  # minmax — o_ref block: (b_tile, 2, groups, hw_t)
        mx = gslice(0)
        mn = mx
        for k in range(1, p):
            s = gslice(k)
            mx = jnp.maximum(mx, s)
            mn = jnp.minimum(mn, s)
        o_ref[:, 0, :, :] = mx
        o_ref[:, 1, :, :] = mn


def _pool_grouped_kernel(x_ref, o_ref, *, method, p):
    # x_ref block: (b_tile, groups, p, hw_t) — used when p is large enough that
    # sublane padding of the p axis is negligible (or as a safe fallback).
    x = x_ref[...]
    if method == "avg":
        s = jnp.sum(x, axis=2, dtype=jnp.float32)
        o_ref[...] = (s / p).astype(o_ref.dtype)
    elif method == "max":
        o_ref[...] = jnp.max(x, axis=2)
    else:  # minmax — o_ref block: (b_tile, 2, groups, hw_t)
        o_ref[:, 0, :, :] = jnp.max(x, axis=2)
        o_ref[:, 1, :, :] = jnp.min(x, axis=2)


def channel_pool2d(x, in_channels, out_channels, method="max"):
    """Pallas TPU implementation of ChannelPool2d.forward (NCHW input)."""
    n, c, h, w = x.shape
    assert c == in_channels
    assert in_channels % out_channels == 0
    p = in_channels // out_channels
    if method == "minmax":
        assert in_channels % (p * 2) == 0
        p = p * 2
    elif method not in ("max", "avg"):
        raise NotImplementedError(method)
    groups = c // p
    out_c = 2 * groups if method == "minmax" else groups
    hw = h * w

    itemsize = jnp.dtype(x.dtype).itemsize
    sub = max(8, 8 * (4 // itemsize))     # sublane tile: 8 f32, 16 bf16, 32 int8
    small_p = p < sub                     # strided layout removes the p->sub padding
    num_tc = _num_tensorcores()

    target_real = 3 << 20                 # ~3 MiB real HBM bytes per grid step
    vmem_budget = 10 << 20                # double-buffered in+out, < 16 MiB v5e default

    def padded_block_bytes(b_tile, hw_t, layout):
        """Dtype-aware padded VMEM footprint (x2 double buffering, in + out)."""
        hw_pad = _round_up(hw_t, 128)
        if layout == "strided":
            in_pad = b_tile * _round_up(c, sub) * hw_pad
        else:
            in_pad = b_tile * groups * _round_up(p, sub) * hw_pad
        if method == "minmax":
            out_pad = b_tile * 2 * _round_up(groups, sub) * hw_pad
        else:
            out_pad = b_tile * _round_up(groups, sub) * hw_pad
        return 2 * (in_pad + out_pad) * itemsize

    def _run(layout):
        # --- block sizing: real HBM bytes drive b_tile; padded VMEM is a cap ---
        per_sample_real = (c + out_c) * hw * itemsize
        b_tile = max(1, min(n, target_real // max(per_sample_real, 1)))
        per_sample_pad = padded_block_bytes(1, hw, layout)
        b_tile = min(b_tile, max(1, vmem_budget // max(per_sample_pad, 1)))

        hw_t = hw
        if per_sample_pad > vmem_budget and hw > 128:
            # A single sample does not fit: tile the flattened spatial axis in
            # 128-lane multiples (the ragged last block is masked by Pallas).
            per_128 = max(1, padded_block_bytes(1, 128, layout))
            hw_t = 128 * max(1, vmem_budget // per_128)
            hw_t = min(hw_t, max(128, (hw // 128) * 128))
            b_tile = 1
        # TODO(synk): hw <= 128 combined with a pathological channel count would
        # additionally need a channel-group grid axis; not implemented.

        steps_b = pl.cdiv(n, b_tile)
        steps_hw = pl.cdiv(hw, hw_t)

        # --- 2-TensorCore load balance, only where 2 TCs exist (v4/v5p/v7x) ---
        if num_tc >= 2:
            if steps_b * steps_hw < num_tc:
                if n >= num_tc:
                    b_tile = pl.cdiv(n, num_tc)
                    steps_b = pl.cdiv(n, b_tile)
                elif hw >= 128 * num_tc and per_sample_real >= (1 << 20):
                    hw_t = max(128, _round_up(pl.cdiv(hw, num_tc), 128))
                    steps_hw = pl.cdiv(hw, hw_t)
            if (steps_b * steps_hw) % num_tc != 0 and steps_b > 1:
                b_tile = max(1, pl.cdiv(n, _round_up(steps_b, num_tc)))
                steps_b = pl.cdiv(n, b_tile)

        grid = (steps_b, steps_hw)

        if layout == "strided":
            x_in = x.reshape(n, c, hw)                       # free reshape
            in_spec = pl.BlockSpec((b_tile, c, hw_t), lambda b, s: (b, 0, s))
            kernel = functools.partial(_pool_strided_kernel,
                                       method=method, p=p, groups=groups)
        else:
            x_in = x.reshape(n, groups, p, hw)               # free reshape
            in_spec = pl.BlockSpec((b_tile, groups, p, hw_t),
                                   lambda b, s: (b, 0, 0, s))
            kernel = functools.partial(_pool_grouped_kernel, method=method, p=p)

        if method == "minmax":
            out_shape = jax.ShapeDtypeStruct((n, 2, groups, hw), x.dtype)
            out_spec = pl.BlockSpec((b_tile, 2, groups, hw_t),
                                    lambda b, s: (b, 0, 0, s))
        else:
            out_shape = jax.ShapeDtypeStruct((n, groups, hw), x.dtype)
            out_spec = pl.BlockSpec((b_tile, groups, hw_t), lambda b, s: (b, 0, s))

        cost = pl.CostEstimate(
            flops=n * c * hw * (2 if method == "minmax" else 1),
            transcendentals=0,
            bytes_accessed=(n * c * hw + n * out_c * hw) * itemsize,
        )

        out = pl.pallas_call(
            kernel,
            out_shape=out_shape,
            grid_spec=pltpu.PrefetchScalarGridSpec(
                num_scalar_prefetch=0,
                grid=grid,
                in_specs=[in_spec],
                out_specs=out_spec,
            ),
            compiler_params=pltpu.CompilerParams(
                dimension_semantics=("parallel", "parallel"),
            ),
            cost_estimate=cost,
        )(x_in)
        return out.reshape(n, out_c, h, w)

    if small_p:
        try:
            return _run("strided")
        except Exception:
            # Strided sublane loads unavailable on this jax/Mosaic build —
            # fall back to the (groups, p, hw) layout (correct, just padded).
            return _run("grouped")
    return _run("grouped")


def _reference(x, in_channels, out_channels, method="max"):
    n, c, h, w = x.shape
    p = in_channels // out_channels
    if method == "minmax":
        p = p * 2
    xr = x.reshape(n, c // p, p, h, w)
    if method == "avg":
        out = jnp.mean(xr, axis=2)
    elif method == "max":
        out = jnp.max(xr, axis=2)
    else:
        out = jnp.concatenate([jnp.max(xr, axis=2), jnp.min(xr, axis=2)], axis=1)
    return out.reshape(n, -1, h, w)


if __name__ == "__main__":
    key = jax.random.PRNGKey(0)
    x = jax.random.normal(key, (2, 4, 16, 16), dtype=jnp.float32)

    for method in ("max", "avg", "minmax"):
        out = channel_pool2d(x, in_channels=4, out_channels=2, method=method)
        out = jax.block_until_ready(out)
        ref = _reference(x, 4, 2, method)
        assert out.shape == ref.shape and out.dtype == x.dtype, method
        assert jnp.allclose(out, ref, atol=1e-5, rtol=1e-5), method

    print("KERNEL_OK")
</pallas_src>

<mosaic_0001>
module attributes {stable_mosaic.version = 11 : i64} {
  func.func @_pool_strided_kernel(%arg0: i32, %arg1: i32, %arg2: memref<2x4x256xf32, #tpu.memory_space<vmem>>, %arg3: memref<2x2x256xf32, #tpu.memory_space<vmem>>) attributes {dimension_semantics = [#tpu.dimension_semantics<parallel>, #tpu.dimension_semantics<parallel>], iteration_bounds = array<i64: 1, 1>, scalar_prefetch = 0 : i64, scratch_operands = 0 : i64, tpu.core_type = #tpu.core_type<tc>, window_params = [{transform_indices = @transform_0, window_bounds = array<i64: 2, 4, 256>}, {transform_indices = @transform_1, window_bounds = array<i64: 2, 2, 256>}]} {
    %c0 = arith.constant 0 : index
    %c0_0 = arith.constant 0 : index
    %c0_1 = arith.constant 0 : index
    %0 = tpu.strided_load %arg2[%c0, %c0_0, %c0_1] {strides = array<i32: 1, 2, 1>} : memref<2x4x256xf32, #tpu.memory_space<vmem>>, vector<2x2x256xf32>
    %c0_2 = arith.constant 0 : index
    %c1 = arith.constant 1 : index
    %c0_3 = arith.constant 0 : index
    %1 = tpu.strided_load %arg2[%c0_2, %c1, %c0_3] {strides = array<i32: 1, 2, 1>} : memref<2x4x256xf32, #tpu.memory_space<vmem>>, vector<2x2x256xf32>
    %2 = arith.maximumf %0, %1 : vector<2x2x256xf32>
    %c0_4 = arith.constant 0 : index
    %c0_5 = arith.constant 0 : index
    %c0_6 = arith.constant 0 : index
    %3 = vector.load %arg3[%c0_4, %c0_5, %c0_6] : memref<2x2x256xf32, #tpu.memory_space<vmem>>, vector<2x2x256xf32>
    tpu.vector_store %arg3[%c0_4, %c0_5, %c0_6], %2 {strides = array<i32>} : memref<2x2x256xf32, #tpu.memory_space<vmem>>, vector<2x2x256xf32>,
    return
  }
  func.func @transform_0(%arg0: i32, %arg1: i32) -> (i32, i32, i32) {
    %c0_i32 = arith.constant 0 : i32
    %c0_i32_0 = arith.constant 0 : i32
    return %arg0, %c0_i32, %arg1 : i32, i32, i32
  }
  func.func @transform_1(%arg0: i32, %arg1: i32) -> (i32, i32, i32) {
    %c0_i32 = arith.constant 0 : i32
    %c0_i32_0 = arith.constant 0 : i32
    return %arg0, %c0_i32, %arg1 : i32, i32, i32
  }
}

module attributes {stable_mosaic.version = 11 : i64} {
  func.func @_pool_grouped_kernel(%arg0: i32, %arg1: i32, %arg2: memref<2x2x2x256xf32, #tpu.memory_space<vmem>>, %arg3: memref<2x2x256xf32, #tpu.memory_space<vmem>>) attributes {dimension_semantics = [#tpu.dimension_semantics<parallel>, #tpu.dimension_semantics<parallel>], iteration_bounds = array<i64: 1, 1>, scalar_prefetch = 0 : i64, scratch_operands = 0 : i64, tpu.core_type = #tpu.core_type<tc>, window_params = [{transform_indices = @transform_0, window_bounds = array<i64: 2, 2, 2, 256>}, {transform_indices = @transform_1, window_bounds = array<i64: 2, 2, 256>}]} {
    %c0 = arith.constant 0 : index
    %c0_0 = arith.constant 0 : index
    %c0_1 = arith.constant 0 : index
    %c0_2 = arith.constant 0 : index
    %0 = vector.load %arg2[%c0, %c0_0, %c0_1, %c0_2] : memref<2x2x2x256xf32, #tpu.memory_space<vmem>>, vector<2x2x2x256xf32>
    %cst = arith.constant dense<0xFF800000> : vector<2x2x256xf32>
    %1 = vector.multi_reduction <maximumf>, %0, %cst [2] : vector<2x2x2x256xf32> to vector<2x2x256xf32>
    %c0_3 = arith.constant 0 : index
    %c0_4 = arith.constant 0 : index
    %c0_5 = arith.constant 0 : index
    %2 = vector.load %arg3[%c0_3, %c0_4, %c0_5] : memref<2x2x256xf32, #tpu.memory_space<vmem>>, vector<2x2x256xf32>
    tpu.vector_store %arg3[%c0_3, %c0_4, %c0_5], %1 {strides = array<i32>} : memref<2x2x256xf32, #tpu.memory_space<vmem>>, vector<2x2x256xf32>,
    return
  }
  func.func @transform_0(%arg0: i32, %arg1: i32) -> (i32, i32, i32, i32) {
    %c0_i32 = arith.constant 0 : i32
    %c0_i32_0 = arith.constant 0 : i32
    %c0_i32_1 = arith.constant 0 : i32
    return %arg0, %c0_i32, %c0_i32_0, %arg1 : i32, i32, i32, i32
  }
  func.func @transform_1(%arg0: i32, %arg1: i32) -> (i32, i32, i32) {
    %c0_i32 = arith.constant 0 : i32
    %c0_i32_0 = arith.constant 0 : i32
    return %arg0, %c0_i32, %arg1 : i32, i32, i32
  }
}

</mosaic_0001>

<llo_original>
// kernel: tpu_custom_call.1
$region0: #{tpu_custom_call.1}
  #allocation0 [shape = 'u32[]', space=smem, size = 0x4, offset = 0x4, fixed_abs, tag = 'smem constant byte address 0x4 - core index']
  #allocation1 [shape = 'u32[144,128]{1,0:T(1,128)}', space=vmem, size = 0x12000, scoped, tag = 'internal scratch']
  %s0 = inlined_call_operand.hbm [shape: f32[2,2,2,256], index: 0, kind: input, shape index: {}]
  %s1 = inlined_call_operand.hbm [shape: f32[2,2,256], index: 1, kind: output, shape index: {}]
  %s2 = sld [smem:[#allocation0]]
  $region18: #{tpu_custom_call.1} parent=0
    _
  %s4 = ssub.s32 1, %s2
  %s5 = scalar_select 0, %s4, %s2
  $region1: #{tpu_custom_call.1} parent=0
    #allocation2 [shape = 'u8[8192]{0}', space=vmem, size = 0x2000, scoped, tag = 'input window, operand 0, single buffered']
    #allocation3 [shape = 's32[1]{0}', space=sflag, size = 0x4, scoped, tag = 'scoped memory for tpu_custom_call.1']
    #allocation4 [shape = 's32[1]{0}', space=sflag, size = 0x4, scoped, tag = 'scoped memory for tpu_custom_call.1']
    #allocation5 [shape = 'u8[4096]{0}', space=vmem, size = 0x1000, scoped, tag = 'output window, operand 0, single buffered']
    %6 = vsyncpa [#allocation3], 0
    %7 = vsyncpa [#allocation4], 0
    // Predicated region
    $region2: #{tpu_custom_call.1} parent=1 // pred_check
      _
    $region3: #{tpu_custom_call.1} parent=1 // pred_check_branch
      %9 = sbr.rel (0) target = $region5
    $region4: #{tpu_custom_call.1} parent=1 // pred_region
      %s11 = ssub.s32 256, 256
      %12 = vsyncadd [#allocation3], %s11
      %s13 = sshll.u32 [#allocation2], 4
      %s14 = int_to_ptr.vmem [resolvable:$true] %s13
      %19 = dma.hbm_to_vmem [thread:$0]  %s0, 256, %s14, [#allocation3], 64, 64, 4
    $region5: #{tpu_custom_call.1} parent=1 // pred_fallthru
      _
    // Predicated region
    $region6: #{tpu_custom_call.1} parent=1 // pred_check
      _
    $region7: #{tpu_custom_call.1} parent=1 // pred_check_branch
      %21 = sbr.rel (0) target = $region9
    $region8: #{tpu_custom_call.1} parent=1 // pred_region
      %22 = dma.done [#allocation3], 256
    $region9: #{tpu_custom_call.1} parent=1 // pred_fallthru
      _
    %v23 = vld [vmem:[#allocation2] sm:$0xf]
    %v24 = vld [vmem:[#allocation2 + $0x4] sm:$0xf]
    %v25 = vld [vmem:[#allocation2 + $0x8] sm:$0xf]
    %v26 = vld [vmem:[#allocation2 + $0xc] sm:$0xf]
    %v32 = vunpack.c.l.s4 1983009808
    %v33 = vunpack.c.0.s8 %v32
    %v34 = vlaneseq
    %v35 = vshrl.u32 %v34, 7
    %v36 = vsub.s32 %v33, %v35
    %v37 = vrot.slane %v23, %v36
    %v38 = vcombine.high %v37, %v37
    %v40 = vunpack.c.l.s4 1983009808
    %v41 = vunpack.c.0.s8 %v40
    %v42 = vlaneseq
    %v43 = vshrl.u32 %v42, 7
    %v44 = vsub.s32 %v41, %v43
    %v45 = vrot.slane %v24, %v44
    %v46 = vcombine.high %v45, %v45
    %v48 = vunpack.c.l.s4 1983009808
    %v49 = vunpack.c.0.s8 %v48
    %v50 = vlaneseq
    %v51 = vshrl.u32 %v50, 7
    %v52 = vsub.s32 %v49, %v51
    %v53 = vrot.slane %v25, %v52
    %v54 = vcombine.high %v53, %v53
    %v56 = vunpack.c.l.s4 1983009808
    %v57 = vunpack.c.0.s8 %v56
    %v58 = vlaneseq
    %v59 = vshrl.u32 %v58, 7
    %v60 = vsub.s32 %v57, %v59
    %v61 = vrot.slane %v26, %v60
    %v62 = vcombine.high %v61, %v61
    %vm71 = vcmask 1041408
    %v72 = vsel %vm71, %v37, -inf
    %v73 = vrot.slane %v72, 4
    %v74 = vmax.f32 %v72, %v73
    %v75 = vrot.slane %v74, 2
    %v76 = vmax.f32 %v74, %v75
    %v77 = vrot.slane %v76, 1
    %v78 = vmax.f32 %v76, %v77
    %v79 = vsel %vm71, %v38, -inf
    %v80 = vrot.slane %v79, 4
    %v81 = vmax.f32 %v79, %v80
    %v82 = vrot.slane %v81, 2
    %v83 = vmax.f32 %v81, %v82
    %v84 = vrot.slane %v83, 1
    %v85 = vmax.f32 %v83, %v84
    %v86 = vsel %vm71, %v45, -inf
    %v87 = vrot.slane %v86, 4
    %v88 = vmax.f32 %v86, %v87
    %v89 = vrot.slane %v88, 2
    %v90 = vmax.f32 %v88, %v89
    %v91 = vrot.slane %v90, 1
    %v92 = vmax.f32 %v90, %v91
    %v93 = vsel %vm71, %v46, -inf
    %v94 = vrot.slane %v93, 4
    %v95 = vmax.f32 %v93, %v94
    %v96 = vrot.slane %v95, 2
    %v97 = vmax.f32 %v95, %v96
    %v98 = vrot.slane %v97, 1
    %v99 = vmax.f32 %v97, %v98
    %v100 = vsel %vm71, %v53, -inf
    %v101 = vrot.slane %v100, 4
    %v102 = vmax.f32 %v100, %v101
    %v103 = vrot.slane %v102, 2
    %v104 = vmax.f32 %v102, %v103
    %v105 = vrot.slane %v104, 1
    %v106 = vmax.f32 %v104, %v105
    %v107 = vsel %vm71, %v54, -inf
    %v108 = vrot.slane %v107, 4
    %v109 = vmax.f32 %v107, %v108
    %v110 = vrot.slane %v109, 2
    %v111 = vmax.f32 %v109, %v110
    %v112 = vrot.slane %v111, 1
    %v113 = vmax.f32 %v111, %v112
    %v114 = vsel %vm71, %v61, -inf
    %v115 = vrot.slane %v114, 4
    %v116 = vmax.f32 %v114, %v115
    %v117 = vrot.slane %v116, 2
    %v118 = vmax.f32 %v116, %v117
    %v119 = vrot.slane %v118, 1
    %v120 = vmax.f32 %v118, %v119
    %v121 = vsel %vm71, %v62, -inf
    %v122 = vrot.slane %v121, 4
    %v123 = vmax.f32 %v121, %v122
    %v124 = vrot.slane %v123, 2
    %v125 = vmax.f32 %v123, %v124
    %v126 = vrot.slane %v125, 1
    %v127 = vmax.f32 %v125, %v126
    %v136 = vcombine.low %v78, %v85
    %v138 = vunpack.c.l.s4 1983009808
    %v139 = vunpack.c.0.s8 %v138
    %v140 = vlaneseq
    %v141 = vshrl.u32 %v140, 7
    %v142 = vsub.s32 %v139, %v141
    %v143 = vrot.slane %v136, %v142
    %v144 = vcombine.low %v92, %v99
    %v146 = vunpack.c.l.s4 1983009808
    %v147 = vunpack.c.0.s8 %v146
    %v148 = vlaneseq
    %v149 = vshrl.u32 %v148, 7
    %v150 = vsub.s32 %v147, %v149
    %v151 = vrot.slane %v144, %v150
    %v152 = vcombine.low %v106, %v113
    %v154 = vunpack.c.l.s4 1983009808
    %v155 = vunpack.c.0.s8 %v154
    %v156 = vlaneseq
    %v157 = vshrl.u32 %v156, 7
    %v158 = vsub.s32 %v155, %v157
    %v159 = vrot.slane %v152, %v158
    %v160 = vcombine.low %v120, %v127
    %v162 = vunpack.c.l.s4 1983009808
    %v163 = vunpack.c.0.s8 %v162
    %v164 = vlaneseq
    %v165 = vshrl.u32 %v164, 7
    %v166 = vsub.s32 %v163, %v165
    %v167 = vrot.slane %v160, %v166
    %vm168 = vcmask 1044484
    %v169 = vsel %vm168, %v143, %v143
    %vm170 = vcmask 1046534
    %v171 = vsel %vm170, %v143, %v169
    %v172 = vrot.slane %v151, 7
    %vm173 = vcmask 1041409
    %v174 = vsel %vm173, %v172, %v171
    %vm175 = vcmask 1043459
    %v176 = vsel %vm175, %v172, %v174
    %vm177 = vcmask 1045509
    %v178 = vsel %vm177, %v172, %v176
    %vm179 = vcmask 1047559
    %v180 = vsel %vm179, %v172, %v178
    %v181 = vsel %vm168, %v159, %v159
    %v182 = vsel %vm170, %v159, %v181
    %v183 = vrot.slane %v167, 7
    %v184 = vsel %vm173, %v183, %v182
    %v185 = vsel %vm175, %v183, %v184
    %v186 = vsel %vm177, %v183, %v185
    %v187 = vsel %vm179, %v183, %v186
    %190 = vst [vmem:[#allocation5] sm:$0xf] %v180
    %191 = vst [vmem:[#allocation5 + $0x4] sm:$0xf] %v187
    // Predicated region
    $region10: #{tpu_custom_call.1} parent=1 // pred_check
      _
    $region11: #{tpu_custom_call.1} parent=1 // pred_check_branch
      %193 = sbr.rel (0) target = $region13
    $region12: #{tpu_custom_call.1} parent=1 // pred_region
      %s195 = ssub.s32 128, 128
      %196 = vsyncadd [#allocation4], %s195
      %s197 = sshll.u32 [#allocation5], 4
      %s198 = int_to_ptr.vmem [resolvable:$true] %s197
      %203 = dma.vmem_to_hbm [thread:$0]  %s198, 128, %s1, [#allocation4], 64, 64, 4
    $region13: #{tpu_custom_call.1} parent=1 // pred_fallthru
      _
    // Predicated region
    $region14: #{tpu_custom_call.1} parent=1 // pred_check
      _
    $region15: #{tpu_custom_call.1} parent=1 // pred_check_branch
      %205 = sbr.rel (0) target = $region17
    $region16: #{tpu_custom_call.1} parent=1 // pred_region
      %206 = dma.done [#allocation4], 128
    $region17: #{tpu_custom_call.1} parent=1 // pred_fallthru
      _
    %207 = vsyncpa [#allocation3], 1
    %208 = vsyncpa [#allocation4], 1

</llo_original>
